<compile_context>
chip_gen: v5e
topology: v5e:2x2
jax: 0.10.0
libtpu: 0.0.40
codegen_flags: <defaults>
</compile_context>

<pallas_src>
import functools

import jax
import jax.numpy as jnp
from jax import lax
from jax.experimental import pallas as pl
from jax.experimental.pallas import tpu as pltpu


# ----------------------------- elementwise helpers (in-kernel) --------------

def _erf(x):
    # Abramowitz & Stegun 7.1.26, |err| < 1.5e-7; matches PyTorch's exact
    # (erf-based) GELU well below the accepted bf16-operand error budget.
    p = 0.3275911
    a1, a2, a3, a4, a5 = (0.254829592, -0.284496736, 1.421413741,
                          -1.453152027, 1.061405429)
    z = jnp.abs(x)
    # EUP approx reciprocal: divide comes off the VALU (review item).
    t = pl.reciprocal(1.0 + p * z, approx=True)
    poly = ((((a5 * t + a4) * t + a3) * t + a2) * t + a1) * t
    y = 1.0 - poly * jnp.exp(-z * z)
    return jnp.where(x >= 0, y, -y)


def _gelu(x):
    return 0.5 * x * (1.0 + _erf(x * 0.7071067811865476))


# ----------------------------- fused DoubleConv kernel ----------------------
#
# Per-sample flat-frame layout (built in-kernel, lane-dense):
#   frame = [BASE zero lanes | image pixels at h*W + w (H*W lanes) | zero tail]
# with BASE a multiple of W (column masks line up), a multiple of 128
# (interior slices / stores are whole vregs) and >= W+1, so every 3x3 tap of
# the interior is a *static* lane slice of the frame (offset dy*W + dx).
# Row-wrap taps (dx = +-1 crossing a row edge) are killed by masking the
# *source* frame at column W-1 / 0 respectively, hoisted out of the tap loop.

def _make_double_conv_kernel(H, W, residual):
    HW = H * W
    BASE = W * max(-(-128 // W), 2)                 # interior start (mult of W, >=128, > W)
    LFX = -(-(BASE + HW + W + 1) // 128) * 128      # frame length (mult of 128)
    TAIL = LFX - BASE - HW                          # >= W + 1
    pow2 = (W & (W - 1)) == 0

    def kernel(x_ref, w1_ref, g1_ref, b1_ref, w2_ref, g2_ref, b2_ref, o_ref):
        x = x_ref[0]                                   # (Cin, HW) f32

        # In-kernel column masks (no mask arrays DMA'd from HBM).
        lane = lax.broadcasted_iota(jnp.int32, (1, LFX), 1)
        col = (lane & (W - 1)) if pow2 else (lane % W)
        m_dxm1 = (col != (W - 1)).astype(jnp.float32)  # source mask for dx = -1 taps
        m_dxp1 = (col != 0).astype(jnp.float32)        # source mask for dx = +1 taps

        def conv3x3(interior, w_folded):
            """3x3 'same' conv: 9 static lane-shifted slices of a zero-guarded
            frame, folded into ONE deep-K bf16 MXU matmul (f32 accumulation)."""
            c = interior.shape[0]
            f0 = jnp.concatenate(
                [jnp.zeros((c, BASE), jnp.float32), interior,
                 jnp.zeros((c, TAIL), jnp.float32)], axis=-1)       # (c, LFX)
            fm = f0 * m_dxm1                    # hoisted row-wrap masks
            fp = f0 * m_dxp1
            taps = []
            for dy in (-1, 0, 1):
                for dx in (-1, 0, 1):
                    src = fm if dx == -1 else (fp if dx == 1 else f0)
                    s = dy * W + dx
                    taps.append(src[:, BASE + s: BASE + s + HW])
            a = jnp.concatenate(taps, axis=0).astype(jnp.bfloat16)  # (9c, HW)
            return jnp.dot(w_folded, a, preferred_element_type=jnp.float32)

        def group_norm1(y, gamma, beta):
            """GroupNorm(num_groups=1): two-pass stats over the HW interior."""
            n = y.shape[0] * y.shape[1]
            mean = jnp.sum(y) * (1.0 / n)
            d = y - mean
            var = jnp.sum(d * d) * (1.0 / n)
            return d * lax.rsqrt(var + 1e-5) * gamma + beta

        # conv1 + GN1 + GELU (interior only; mid activation stays on-chip).
        y1 = conv3x3(x, w1_ref[...])                               # (Cmid, HW)
        h1 = _gelu(group_norm1(y1, g1_ref[...], b1_ref[...]))
        # conv2 + GN2 (lane-dense (Cout, HW) output).
        y2 = conv3x3(h1, w2_ref[...])                              # (Cout, HW)
        y2 = group_norm1(y2, g2_ref[...], b2_ref[...])
        if residual:                                # F.gelu(x + double_conv(x))
            y2 = _gelu(x + y2)                      # residual add stays f32
        o_ref[0] = y2

    return kernel


@functools.partial(jax.jit, static_argnames=("residual",))
def double_conv(x, w1, g1, b1, w2, g2, b2, *, residual=False):
    """PyTorch DoubleConv forward.  x: (B, Cin, H, W) NCHW; conv weights in
    torch layout (Cout, Cin, 3, 3), no bias; gamma/beta: (C,)."""
    B, Cin, H, W = x.shape
    Cmid = w1.shape[0]
    Cout = w2.shape[0]
    if residual and Cin != Cout:
        raise ValueError("residual DoubleConv requires in_channels == out_channels")
    HW = H * W

    # Free reshape only -- no padded HBM copy of the input.
    xr = x.reshape(B, Cin, HW)

    # torch (Cout, Cin, ky, kx) -> folded (Cout, 9*Cin) with contraction index
    # (3*ky + kx)*Cin + cin, matching the in-kernel tap-concatenation order.
    # bf16 in HBM: halves the weight DMA and removes the per-step cast.
    w1k = jnp.transpose(w1, (0, 2, 3, 1)).reshape(Cmid, 9 * Cin).astype(jnp.bfloat16)
    w2k = jnp.transpose(w2, (0, 2, 3, 1)).reshape(Cout, 9 * Cmid).astype(jnp.bfloat16)

    out = pl.pallas_call(
        _make_double_conv_kernel(H, W, residual),
        out_shape=jax.ShapeDtypeStruct((B, Cout, HW), jnp.float32),
        grid=(B,),
        in_specs=[
            pl.BlockSpec((1, Cin, HW), lambda b: (b, 0, 0)),
            pl.BlockSpec((Cmid, 9 * Cin), lambda b: (0, 0)),
            pl.BlockSpec((Cmid, 1), lambda b: (0, 0)),
            pl.BlockSpec((Cmid, 1), lambda b: (0, 0)),
            pl.BlockSpec((Cout, 9 * Cmid), lambda b: (0, 0)),
            pl.BlockSpec((Cout, 1), lambda b: (0, 0)),
            pl.BlockSpec((Cout, 1), lambda b: (0, 0)),
        ],
        out_specs=pl.BlockSpec((1, Cout, HW), lambda b: (b, 0, 0)),
        compiler_params=pltpu.CompilerParams(
            dimension_semantics=("parallel",)),
    )(xr, w1k, g1.reshape(Cmid, 1), b1.reshape(Cmid, 1),
      w2k, g2.reshape(Cout, 1), b2.reshape(Cout, 1))
    return out.reshape(B, Cout, H, W)


# ----------------------------- pure-JAX reference ----------------------------

def double_conv_ref(x, w1, g1, b1, w2, g2, b2, residual=False):
    def conv(v, w):
        return lax.conv_general_dilated(
            v, w, window_strides=(1, 1), padding="SAME",
            dimension_numbers=("NCHW", "OIHW", "NCHW"))

    def gn(v, g, b):
        m = jnp.mean(v, axis=(1, 2, 3), keepdims=True)
        var = jnp.var(v, axis=(1, 2, 3), keepdims=True)
        return ((v - m) * lax.rsqrt(var + 1e-5)
                * g[None, :, None, None] + b[None, :, None, None])

    h = jax.nn.gelu(gn(conv(x, w1), g1, b1), approximate=False)
    h = gn(conv(h, w2), g2, b2)
    return jax.nn.gelu(x + h, approximate=False) if residual else h


# ----------------------------- driver ----------------------------------------

if __name__ == "__main__":
    key = jax.random.PRNGKey(0)
    ks = jax.random.split(key, 16)
    B, H, W = 2, 16, 16

    def winit(k, shape, scale=0.1):
        return scale * jax.random.normal(k, shape, dtype=jnp.float32)

    # --- instance A: DoubleConv(in=4, out=8)  (mid defaults to out) ----------
    cin_a, cmid_a, cout_a = 4, 8, 8
    w1a = winit(ks[0], (cmid_a, cin_a, 3, 3))
    g1a = 1.0 + winit(ks[1], (cmid_a,))
    b1a = winit(ks[2], (cmid_a,))
    w2a = winit(ks[3], (cout_a, cmid_a, 3, 3))
    g2a = 1.0 + winit(ks[4], (cout_a,))
    b2a = winit(ks[5], (cout_a,))
    xa = jax.random.normal(ks[6], (B, cin_a, H, W), dtype=jnp.float32)

    out_a = jax.block_until_ready(
        double_conv(xa, w1a, g1a, b1a, w2a, g2a, b2a, residual=False))
    ref_a = double_conv_ref(xa, w1a, g1a, b1a, w2a, g2a, b2a, residual=False)

    # --- instance B: DoubleConv(in=4, out=4, residual=True) ------------------
    cin_b = cmid_b = cout_b = 4
    w1b = winit(ks[7], (cmid_b, cin_b, 3, 3))
    g1b = 1.0 + winit(ks[8], (cmid_b,))
    b1b = winit(ks[9], (cmid_b,))
    w2b = winit(ks[10], (cout_b, cmid_b, 3, 3))
    g2b = 1.0 + winit(ks[11], (cout_b,))
    b2b = winit(ks[12], (cout_b,))
    xb = jax.random.normal(ks[13], (B, cin_b, H, W), dtype=jnp.float32)

    out_b = jax.block_until_ready(
        double_conv(xb, w1b, g1b, b1b, w2b, g2b, b2b, residual=True))
    ref_b = double_conv_ref(xb, w1b, g1b, b1b, w2b, g2b, b2b, residual=True)

    assert out_a.shape == (B, cout_a, H, W), out_a.shape
    assert out_b.shape == (B, cout_b, H, W), out_b.shape
    assert bool(jnp.all(jnp.isfinite(out_a))) and bool(jnp.all(jnp.isfinite(out_b)))
    # bf16 MXU operands (f32 accumulation) -> loose bound vs. the f32 reference.
    err_a = float(jnp.max(jnp.abs(out_a - ref_a)))
    err_b = float(jnp.max(jnp.abs(out_b - ref_b)))
    assert err_a < 0.15 and err_b < 0.15, (err_a, err_b)
    print("KERNEL_OK")
</pallas_src>

<mosaic_0001>
module attributes {stable_mosaic.version = 11 : i64} {
  func.func @kernel(%arg0: i32, %arg1: memref<1x4x256xf32, #tpu.memory_space<vmem>>, %arg2: memref<8x36xbf16, #tpu.memory_space<vmem>>, %arg3: memref<8x1xf32, #tpu.memory_space<vmem>>, %arg4: memref<8x1xf32, #tpu.memory_space<vmem>>, %arg5: memref<8x72xbf16, #tpu.memory_space<vmem>>, %arg6: memref<8x1xf32, #tpu.memory_space<vmem>>, %arg7: memref<8x1xf32, #tpu.memory_space<vmem>>, %arg8: memref<1x8x256xf32, #tpu.memory_space<vmem>>) attributes {dimension_semantics = [#tpu.dimension_semantics<parallel>], iteration_bounds = array<i64: 2>, scalar_prefetch = 0 : i64, scratch_operands = 0 : i64, tpu.core_type = #tpu.core_type<tc>, window_params = [{transform_indices = @transform_0, window_bounds = array<i64: 1, 4, 256>}, {pipeline_mode = #tpu.pipeline_mode<synchronous>, transform_indices = @transform_1, window_bounds = array<i64: 8, 36>}, {pipeline_mode = #tpu.pipeline_mode<synchronous>, transform_indices = @transform_2, window_bounds = array<i64: 8, 1>}, {pipeline_mode = #tpu.pipeline_mode<synchronous>, transform_indices = @transform_3, window_bounds = array<i64: 8, 1>}, {pipeline_mode = #tpu.pipeline_mode<synchronous>, transform_indices = @transform_4, window_bounds = array<i64: 8, 72>}, {pipeline_mode = #tpu.pipeline_mode<synchronous>, transform_indices = @transform_5, window_bounds = array<i64: 8, 1>}, {pipeline_mode = #tpu.pipeline_mode<synchronous>, transform_indices = @transform_6, window_bounds = array<i64: 8, 1>}, {transform_indices = @transform_7, window_bounds = array<i64: 1, 8, 256>}]} {
    %c0 = arith.constant 0 : index
    %c0_0 = arith.constant 0 : index
    %c0_1 = arith.constant 0 : index
    %0 = vector.load %arg1[%c0, %c0_0, %c0_1] : memref<1x4x256xf32, #tpu.memory_space<vmem>>, vector<1x4x256xf32>
    %1 = vector.shape_cast %0 : vector<1x4x256xf32> to vector<4x256xf32>
    %2 = tpu.iota {dimensions = array<i32: 1>} : vector<1x512xi32>
    %c15_i32 = arith.constant 15 : i32
    %3 = vector.broadcast %c15_i32 : i32 to vector<1x512xi32>
    %4 = arith.andi %2, %3 : vector<1x512xi32>
    %c15_i32_2 = arith.constant 15 : i32
    %5 = vector.broadcast %c15_i32_2 : i32 to vector<1x512xi32>
    %6 = arith.cmpi ne, %4, %5 : vector<1x512xi32>
    %7 = arith.extui %6 : vector<1x512xi1> to vector<1x512xi32>
    %8 = arith.sitofp %7 : vector<1x512xi32> to vector<1x512xf32>
    %c0_i32 = arith.constant 0 : i32
    %9 = vector.broadcast %c0_i32 : i32 to vector<1x512xi32>
    %10 = arith.cmpi ne, %4, %9 : vector<1x512xi32>
    %11 = arith.extui %10 : vector<1x512xi1> to vector<1x512xi32>
    %12 = arith.sitofp %11 : vector<1x512xi32> to vector<1x512xf32>
    %c0_3 = arith.constant 0 : index
    %c0_4 = arith.constant 0 : index
    %13 = vector.load %arg2[%c0_3, %c0_4] : memref<8x36xbf16, #tpu.memory_space<vmem>>, vector<8x36xbf16>
    %cst = arith.constant 0.000000e+00 : f32
    %14 = vector.broadcast %cst : f32 to vector<4x128xf32>
    %cst_5 = arith.constant 0.000000e+00 : f32
    %15 = vector.broadcast %cst_5 : f32 to vector<4x128xf32>
    %16 = tpu.concatenate %14, %1, %15 in 1 : vector<4x128xf32>, vector<4x256xf32>, vector<4x128xf32> -> vector<4x512xf32>
    %17 = vector.broadcast %8 : vector<1x512xf32> to vector<4x512xf32>
    %18 = arith.mulf %16, %17 : vector<4x512xf32>
    %19 = vector.broadcast %12 : vector<1x512xf32> to vector<4x512xf32>
    %20 = arith.mulf %16, %19 : vector<4x512xf32>
    %21 = vector.extract_strided_slice %18 {offsets = [0, 111], sizes = [4, 256], strides = [1, 1]} : vector<4x512xf32> to vector<4x256xf32>
    %22 = vector.extract_strided_slice %16 {offsets = [0, 112], sizes = [4, 256], strides = [1, 1]} : vector<4x512xf32> to vector<4x256xf32>
    %23 = vector.extract_strided_slice %20 {offsets = [0, 113], sizes = [4, 256], strides = [1, 1]} : vector<4x512xf32> to vector<4x256xf32>
    %24 = vector.extract_strided_slice %18 {offsets = [0, 127], sizes = [4, 256], strides = [1, 1]} : vector<4x512xf32> to vector<4x256xf32>
    %25 = vector.extract_strided_slice %16 {offsets = [0, 128], sizes = [4, 256], strides = [1, 1]} : vector<4x512xf32> to vector<4x256xf32>
    %26 = vector.extract_strided_slice %20 {offsets = [0, 129], sizes = [4, 256], strides = [1, 1]} : vector<4x512xf32> to vector<4x256xf32>
    %27 = vector.extract_strided_slice %18 {offsets = [0, 143], sizes = [4, 256], strides = [1, 1]} : vector<4x512xf32> to vector<4x256xf32>
    %28 = vector.extract_strided_slice %16 {offsets = [0, 144], sizes = [4, 256], strides = [1, 1]} : vector<4x512xf32> to vector<4x256xf32>
    %29 = vector.extract_strided_slice %20 {offsets = [0, 145], sizes = [4, 256], strides = [1, 1]} : vector<4x512xf32> to vector<4x256xf32>
    %30 = tpu.concatenate %21, %22, %23, %24, %25, %26, %27, %28, %29 in 0 : vector<4x256xf32>, vector<4x256xf32>, vector<4x256xf32>, vector<4x256xf32>, vector<4x256xf32>, vector<4x256xf32>, vector<4x256xf32>, vector<4x256xf32>, vector<4x256xf32> -> vector<36x256xf32>
    %31 = arith.truncf %30 : vector<36x256xf32> to vector<36x256xbf16>
    %cst_6 = arith.constant dense<0.000000e+00> : vector<8x256xf32>
    %32 = tpu.matmul %13, %31, %cst_6 {dimension_numbers = #tpu.dot_dimension_numbers<[1], [0], [0], [1], [0, 0, 1, 1], [], []>} : vector<8x36xbf16>, vector<36x256xbf16>, vector<8x256xf32> -> vector<8x256xf32>
    %c0_7 = arith.constant 0 : index
    %c0_8 = arith.constant 0 : index
    %33 = vector.load %arg3[%c0_7, %c0_8] : memref<8x1xf32, #tpu.memory_space<vmem>>, vector<8x1xf32>
    %c0_9 = arith.constant 0 : index
    %c0_10 = arith.constant 0 : index
    %34 = vector.load %arg4[%c0_9, %c0_10] : memref<8x1xf32, #tpu.memory_space<vmem>>, vector<8x1xf32>
    %35 = vector.shape_cast %32 : vector<8x256xf32> to vector<1x8x256xf32>
    %cst_11 = arith.constant dense<0.000000e+00> : vector<1xf32>
    %36 = vector.multi_reduction <add>, %35, %cst_11 [1, 2] : vector<1x8x256xf32> to vector<1xf32>
    %37 = vector.shape_cast %36 : vector<1xf32> to vector<1x1x1xf32>
    %38 = vector.extract %37[0, 0, 0] : f32 from vector<1x1x1xf32>
    %cst_12 = arith.constant 4.8828125E-4 : f32
    %39 = arith.mulf %38, %cst_12 : f32
    %40 = vector.broadcast %39 : f32 to vector<8x256xf32>
    %41 = arith.subf %32, %40 : vector<8x256xf32>
    %42 = arith.mulf %41, %41 : vector<8x256xf32>
    %43 = vector.shape_cast %42 : vector<8x256xf32> to vector<1x8x256xf32>
    %cst_13 = arith.constant dense<0.000000e+00> : vector<1xf32>
    %44 = vector.multi_reduction <add>, %43, %cst_13 [1, 2] : vector<1x8x256xf32> to vector<1xf32>
    %45 = vector.shape_cast %44 : vector<1xf32> to vector<1x1x1xf32>
    %46 = vector.extract %45[0, 0, 0] : f32 from vector<1x1x1xf32>
    %cst_14 = arith.constant 4.8828125E-4 : f32
    %47 = arith.mulf %46, %cst_14 : f32
    %cst_15 = arith.constant 9.99999974E-6 : f32
    %48 = arith.addf %47, %cst_15 : f32
    %49 = math.rsqrt %48 : f32
    %50 = vector.broadcast %49 : f32 to vector<8x256xf32>
    %51 = arith.mulf %41, %50 : vector<8x256xf32>
    %52 = vector.broadcast %33 : vector<8x1xf32> to vector<8x256xf32>
    %53 = arith.mulf %51, %52 : vector<8x256xf32>
    %54 = vector.broadcast %34 : vector<8x1xf32> to vector<8x256xf32>
    %55 = arith.addf %53, %54 : vector<8x256xf32>
    %cst_16 = arith.constant 5.000000e-01 : f32
    %56 = vector.broadcast %cst_16 : f32 to vector<8x256xf32>
    %57 = arith.mulf %56, %55 : vector<8x256xf32>
    %cst_17 = arith.constant 0.707106769 : f32
    %58 = vector.broadcast %cst_17 : f32 to vector<8x256xf32>
    %59 = arith.mulf %55, %58 : vector<8x256xf32>
    %60 = math.absf %59 : vector<8x256xf32>
    %cst_18 = arith.constant 0.327591091 : f32
    %61 = vector.broadcast %cst_18 : f32 to vector<8x256xf32>
    %62 = arith.mulf %61, %60 : vector<8x256xf32>
    %cst_19 = arith.constant 1.000000e+00 : f32
    %63 = vector.broadcast %cst_19 : f32 to vector<8x256xf32>
    %64 = arith.addf %63, %62 : vector<8x256xf32>
    %65 = tpu.reciprocal %64 {approx = true} : vector<8x256xf32> -> vector<8x256xf32>
    %cst_20 = arith.constant 1.06140542 : f32
    %66 = vector.broadcast %cst_20 : f32 to vector<8x256xf32>
    %67 = arith.mulf %66, %65 : vector<8x256xf32>
    %cst_21 = arith.constant -1.45315206 : f32
    %68 = vector.broadcast %cst_21 : f32 to vector<8x256xf32>
    %69 = arith.addf %67, %68 : vector<8x256xf32>
    %70 = arith.mulf %69, %65 : vector<8x256xf32>
    %cst_22 = arith.constant 1.42141378 : f32
    %71 = vector.broadcast %cst_22 : f32 to vector<8x256xf32>
    %72 = arith.addf %70, %71 : vector<8x256xf32>
    %73 = arith.mulf %72, %65 : vector<8x256xf32>
    %cst_23 = arith.constant -0.284496725 : f32
    %74 = vector.broadcast %cst_23 : f32 to vector<8x256xf32>
    %75 = arith.addf %73, %74 : vector<8x256xf32>
    %76 = arith.mulf %75, %65 : vector<8x256xf32>
    %cst_24 = arith.constant 0.254829586 : f32
    %77 = vector.broadcast %cst_24 : f32 to vector<8x256xf32>
    %78 = arith.addf %76, %77 : vector<8x256xf32>
    %79 = arith.mulf %78, %65 : vector<8x256xf32>
    %cst_25 = arith.constant 0.000000e+00 : f32
    %80 = vector.broadcast %cst_25 : f32 to vector<8x256xf32>
    %81 = arith.subf %80, %60 : vector<8x256xf32>
    %82 = arith.mulf %81, %60 : vector<8x256xf32>
    %83 = math.exp %82 : vector<8x256xf32>
    %84 = arith.mulf %79, %83 : vector<8x256xf32>
    %cst_26 = arith.constant 1.000000e+00 : f32
    %85 = vector.broadcast %cst_26 : f32 to vector<8x256xf32>
    %86 = arith.subf %85, %84 : vector<8x256xf32>
    %cst_27 = arith.constant 0.000000e+00 : f32
    %87 = vector.broadcast %cst_27 : f32 to vector<8x256xf32>
    %88 = arith.cmpf oge, %59, %87 : vector<8x256xf32>
    %cst_28 = arith.constant 0.000000e+00 : f32
    %89 = vector.broadcast %cst_28 : f32 to vector<8x256xf32>
    %90 = arith.subf %89, %86 : vector<8x256xf32>
    %91 = arith.select %88, %86, %90 : vector<8x256xi1>, vector<8x256xf32>
    %cst_29 = arith.constant 1.000000e+00 : f32
    %92 = vector.broadcast %cst_29 : f32 to vector<8x256xf32>
    %93 = arith.addf %92, %91 : vector<8x256xf32>
    %94 = arith.mulf %57, %93 : vector<8x256xf32>
    %c0_30 = arith.constant 0 : index
    %c0_31 = arith.constant 0 : index
    %95 = vector.load %arg5[%c0_30, %c0_31] : memref<8x72xbf16, #tpu.memory_space<vmem>>, vector<8x72xbf16>
    %cst_32 = arith.constant 0.000000e+00 : f32
    %96 = vector.broadcast %cst_32 : f32 to vector<8x128xf32>
    %cst_33 = arith.constant 0.000000e+00 : f32
    %97 = vector.broadcast %cst_33 : f32 to vector<8x128xf32>
    %98 = tpu.concatenate %96, %94, %97 in 1 : vector<8x128xf32>, vector<8x256xf32>, vector<8x128xf32> -> vector<8x512xf32>
    %99 = vector.broadcast %8 : vector<1x512xf32> to vector<8x512xf32>
    %100 = arith.mulf %98, %99 : vector<8x512xf32>
    %101 = vector.broadcast %12 : vector<1x512xf32> to vector<8x512xf32>
    %102 = arith.mulf %98, %101 : vector<8x512xf32>
    %103 = vector.extract_strided_slice %100 {offsets = [0, 111], sizes = [8, 256], strides = [1, 1]} : vector<8x512xf32> to vector<8x256xf32>
    %104 = vector.extract_strided_slice %98 {offsets = [0, 112], sizes = [8, 256], strides = [1, 1]} : vector<8x512xf32> to vector<8x256xf32>
    %105 = vector.extract_strided_slice %102 {offsets = [0, 113], sizes = [8, 256], strides = [1, 1]} : vector<8x512xf32> to vector<8x256xf32>
    %106 = vector.extract_strided_slice %100 {offsets = [0, 127], sizes = [8, 256], strides = [1, 1]} : vector<8x512xf32> to vector<8x256xf32>
    %107 = vector.extract_strided_slice %98 {offsets = [0, 128], sizes = [8, 256], strides = [1, 1]} : vector<8x512xf32> to vector<8x256xf32>
    %108 = vector.extract_strided_slice %102 {offsets = [0, 129], sizes = [8, 256], strides = [1, 1]} : vector<8x512xf32> to vector<8x256xf32>
    %109 = vector.extract_strided_slice %100 {offsets = [0, 143], sizes = [8, 256], strides = [1, 1]} : vector<8x512xf32> to vector<8x256xf32>
    %110 = vector.extract_strided_slice %98 {offsets = [0, 144], sizes = [8, 256], strides = [1, 1]} : vector<8x512xf32> to vector<8x256xf32>
    %111 = vector.extract_strided_slice %102 {offsets = [0, 145], sizes = [8, 256], strides = [1, 1]} : vector<8x512xf32> to vector<8x256xf32>
    %112 = tpu.concatenate %103, %104, %105, %106, %107, %108, %109, %110, %111 in 0 : vector<8x256xf32>, vector<8x256xf32>, vector<8x256xf32>, vector<8x256xf32>, vector<8x256xf32>, vector<8x256xf32>, vector<8x256xf32>, vector<8x256xf32>, vector<8x256xf32> -> vector<72x256xf32>
    %113 = arith.truncf %112 : vector<72x256xf32> to vector<72x256xbf16>
    %cst_34 = arith.constant dense<0.000000e+00> : vector<8x256xf32>
    %114 = tpu.matmul %95, %113, %cst_34 {dimension_numbers = #tpu.dot_dimension_numbers<[1], [0], [0], [1], [0, 0, 1, 1], [], []>} : vector<8x72xbf16>, vector<72x256xbf16>, vector<8x256xf32> -> vector<8x256xf32>
    %c0_35 = arith.constant 0 : index
    %c0_36 = arith.constant 0 : index
    %115 = vector.load %arg6[%c0_35, %c0_36] : memref<8x1xf32, #tpu.memory_space<vmem>>, vector<8x1xf32>
    %c0_37 = arith.constant 0 : index
    %c0_38 = arith.constant 0 : index
    %116 = vector.load %arg7[%c0_37, %c0_38] : memref<8x1xf32, #tpu.memory_space<vmem>>, vector<8x1xf32>
    %117 = vector.shape_cast %114 : vector<8x256xf32> to vector<1x8x256xf32>
    %cst_39 = arith.constant dense<0.000000e+00> : vector<1xf32>
    %118 = vector.multi_reduction <add>, %117, %cst_39 [1, 2] : vector<1x8x256xf32> to vector<1xf32>
    %119 = vector.shape_cast %118 : vector<1xf32> to vector<1x1x1xf32>
    %120 = vector.extract %119[0, 0, 0] : f32 from vector<1x1x1xf32>
    %cst_40 = arith.constant 4.8828125E-4 : f32
    %121 = arith.mulf %120, %cst_40 : f32
    %122 = vector.broadcast %121 : f32 to vector<8x256xf32>
    %123 = arith.subf %114, %122 : vector<8x256xf32>
    %124 = arith.mulf %123, %123 : vector<8x256xf32>
    %125 = vector.shape_cast %124 : vector<8x256xf32> to vector<1x8x256xf32>
    %cst_41 = arith.constant dense<0.000000e+00> : vector<1xf32>
    %126 = vector.multi_reduction <add>, %125, %cst_41 [1, 2] : vector<1x8x256xf32> to vector<1xf32>
    %127 = vector.shape_cast %126 : vector<1xf32> to vector<1x1x1xf32>
    %128 = vector.extract %127[0, 0, 0] : f32 from vector<1x1x1xf32>
    %cst_42 = arith.constant 4.8828125E-4 : f32
    %129 = arith.mulf %128, %cst_42 : f32
    %cst_43 = arith.constant 9.99999974E-6 : f32
    %130 = arith.addf %129, %cst_43 : f32
    %131 = math.rsqrt %130 : f32
    %132 = vector.broadcast %131 : f32 to vector<8x256xf32>
    %133 = arith.mulf %123, %132 : vector<8x256xf32>
    %134 = vector.broadcast %115 : vector<8x1xf32> to vector<8x256xf32>
    %135 = arith.mulf %133, %134 : vector<8x256xf32>
    %136 = vector.broadcast %116 : vector<8x1xf32> to vector<8x256xf32>
    %137 = arith.addf %135, %136 : vector<8x256xf32>
    %c0_44 = arith.constant 0 : index
    %c0_45 = arith.constant 0 : index
    %c0_46 = arith.constant 0 : index
    %138 = vector.load %arg8[%c0_44, %c0_45, %c0_46] : memref<1x8x256xf32, #tpu.memory_space<vmem>>, vector<1x8x256xf32>
    %139 = vector.shape_cast %138 : vector<1x8x256xf32> to vector<8x256xf32>
    %140 = vector.shape_cast %137 : vector<8x256xf32> to vector<1x8x256xf32>
    tpu.vector_store %arg8[%c0_44, %c0_45, %c0_46], %140 {strides = array<i32>} : memref<1x8x256xf32, #tpu.memory_space<vmem>>, vector<1x8x256xf32>,
    return
  }
  func.func @transform_0(%arg0: i32) -> (i32, i32, i32) {
    %c0_i32 = arith.constant 0 : i32
    %c0_i32_0 = arith.constant 0 : i32
    %c0_i32_1 = arith.constant 0 : i32
    return %arg0, %c0_i32, %c0_i32_0 : i32, i32, i32
  }
  func.func @transform_1(%arg0: i32) -> (i32, i32) {
    %c0_i32 = arith.constant 0 : i32
    %c0_i32_0 = arith.constant 0 : i32
    %c0_i32_1 = arith.constant 0 : i32
    return %c0_i32, %c0_i32_0 : i32, i32
  }
  func.func @transform_2(%arg0: i32) -> (i32, i32) {
    %c0_i32 = arith.constant 0 : i32
    %c0_i32_0 = arith.constant 0 : i32
    %c0_i32_1 = arith.constant 0 : i32
    return %c0_i32, %c0_i32_0 : i32, i32
  }
  func.func @transform_3(%arg0: i32) -> (i32, i32) {
    %c0_i32 = arith.constant 0 : i32
    %c0_i32_0 = arith.constant 0 : i32
    %c0_i32_1 = arith.constant 0 : i32
    return %c0_i32, %c0_i32_0 : i32, i32
  }
  func.func @transform_4(%arg0: i32) -> (i32, i32) {
    %c0_i32 = arith.constant 0 : i32
    %c0_i32_0 = arith.constant 0 : i32
    %c0_i32_1 = arith.constant 0 : i32
    return %c0_i32, %c0_i32_0 : i32, i32
  }
  func.func @transform_5(%arg0: i32) -> (i32, i32) {
    %c0_i32 = arith.constant 0 : i32
    %c0_i32_0 = arith.constant 0 : i32
    %c0_i32_1 = arith.constant 0 : i32
    return %c0_i32, %c0_i32_0 : i32, i32
  }
  func.func @transform_6(%arg0: i32) -> (i32, i32) {
    %c0_i32 = arith.constant 0 : i32
    %c0_i32_0 = arith.constant 0 : i32
    %c0_i32_1 = arith.constant 0 : i32
    return %c0_i32, %c0_i32_0 : i32, i32
  }
  func.func @transform_7(%arg0: i32) -> (i32, i32, i32) {
    %c0_i32 = arith.constant 0 : i32
    %c0_i32_0 = arith.constant 0 : i32
    %c0_i32_1 = arith.constant 0 : i32
    return %arg0, %c0_i32, %c0_i32_0 : i32, i32, i32
  }
}

</mosaic_0001>

<llo_original>
// kernel: double_conv.1
$region0: #{double_conv.1}
  #allocation0 [shape = 'u32[]', space=smem, size = 0x4, offset = 0x4, fixed_abs, tag = 'smem constant byte address 0x4 - core index']
  #allocation1 [shape = 'u32[72,128]{1,0:T(1,128)}', space=vmem, size = 0x9000, scoped, tag = 'internal scratch']
  %s0 = inlined_call_operand.vmem [shape: f32[2,4,256], index: 0, kind: input, shape index: {}]
  %s1 = inlined_call_operand.vmem [shape: bf16[8,36], index: 1, kind: input, shape index: {}]
  %s2 = inlined_call_operand.vmem [shape: f32[8,1], index: 2, kind: input, shape index: {}]
  %s3 = inlined_call_operand.vmem [shape: f32[8,1], index: 3, kind: input, shape index: {}]
  %s4 = inlined_call_operand.vmem [shape: bf16[8,72], index: 4, kind: input, shape index: {}]
  %s5 = inlined_call_operand.vmem [shape: f32[8,1], index: 5, kind: input, shape index: {}]
  %s6 = inlined_call_operand.vmem [shape: f32[8,1], index: 6, kind: input, shape index: {}]
  %s7 = inlined_call_operand.vmem [shape: f32[2,8,256], index: 7, kind: output, shape index: {}]
  %s8 = sld [smem:[#allocation0]]
  $region61: #{double_conv.1} parent=0
    _
  %s10 = ssub.s32 1, %s8
  %s11 = scalar_select 0, %s10, %s8
  loop: start=0, step=1, limit=4
  $region2: #{double_conv.1} parent=0 // loop_pre_header
    _
  $region3: #{double_conv.1} parent=0 // loop_header
    %s13 = sphi 0, %s17
    %p14 = scmp.ge.s32.totalorder %s13, 4
    %s23 = sphi 0, %s25
    %s26 = sphi 0, %s23
    %s27 = sphi 0, %s26
    %s43 = sphi 0, %s27
    %s47 = sphi 0, %s47
    %s49 = sphi 0, %s47
    %s50 = sphi 0, %s49
    %s64 = sphi 0, %s50
    %s68 = sphi 0, %s68
    %s70 = sphi 0, %s68
    %s71 = sphi 0, %s70
    %s85 = sphi 0, %s71
    %s89 = sphi 0, %s89
    %s91 = sphi 0, %s89
    %s92 = sphi 0, %s91
    %s106 = sphi 0, %s92
    %s110 = sphi 0, %s110
    %s112 = sphi 0, %s110
    %s113 = sphi 0, %s112
    %s127 = sphi 0, %s113
    %s131 = sphi 0, %s131
    %s133 = sphi 0, %s131
    %s134 = sphi 0, %s133
    %s148 = sphi 0, %s134
    %s152 = sphi 0, %s152
    %s154 = sphi 0, %s152
    %s155 = sphi 0, %s154
    %s169 = sphi 0, %s155
    %s175 = sphi 0, %s177
    %s178 = sphi 0, %s175
    %s179 = sphi 0, %s178
    %s195 = sphi 0, %s179
  $region4: #{double_conv.1} parent=0 // loop_header_branch
    %16 = sbr.rel (%p14) target = $region8
  $region5: #{double_conv.1} parent=0 // loop_body
    %s18 = ssub.s32 %s13, 1
    %s19 = ssub.s32 %s13, 2
    %s20 = sadd.s32 %s13, 1
    %s21 = ssub.s32 %s13, %s20
    %p22 = scmp.eq.s32.totalorder %s21, 0
    %s24 = sadd.s32 %s23, 1
    %s25 = scalar_select %p22, %s23, %s24
    %p28 = pneg %p22
    %p29 = scmp.eq.s32.totalorder %s13, 1
    %p30 = por %p28, %p29
    %p31 = scmp.ne.s32.totalorder %s23, %s26
    %p32 = scmp.eq.s32.totalorder %s13, 0
    %p33 = por %p31, %p32
    %p34 = scmp.ne.s32.totalorder %s23, %s26
    %p35 = scmp.eq.s32.totalorder %s18, 1
    %p36 = por %p34, %p35
    %p37 = scmp.ne.s32.totalorder %s26, %s27
    %p38 = scmp.eq.s32.totalorder %s18, 0
    %p39 = por %p37, %p38
    %p40 = scmp.ne.s32.totalorder %s26, %s27
    %p41 = scmp.eq.s32.totalorder %s19, 1
    %p42 = por %p40, %p41
    %p44 = scmp.ne.s32.totalorder %s27, %s43
    %p45 = scmp.eq.s32.totalorder %s19, 0
    %p46 = por %p44, %p45
    %s48 = sadd.s32 %s47, 1
    %p51 = scmp.eq.s32.totalorder %s13, 1
    %p52 = scmp.ne.s32.totalorder %s47, %s49
    %p53 = scmp.eq.s32.totalorder %s13, 0
    %p54 = por %p52, %p53
    %p55 = scmp.ne.s32.totalorder %s47, %s49
    %p56 = scmp.eq.s32.totalorder %s18, 1
    %p57 = por %p55, %p56
    %p58 = scmp.ne.s32.totalorder %s49, %s50
    %p59 = scmp.eq.s32.totalorder %s18, 0
    %p60 = por %p58, %p59
    %p61 = scmp.ne.s32.totalorder %s49, %s50
    %p62 = scmp.eq.s32.totalorder %s19, 1
    %p63 = por %p61, %p62
    %p65 = scmp.ne.s32.totalorder %s50, %s64
    %p66 = scmp.eq.s32.totalorder %s19, 0
    %p67 = por %p65, %p66
    %s69 = sadd.s32 %s68, 1
    %p72 = scmp.eq.s32.totalorder %s13, 1
    %p73 = scmp.ne.s32.totalorder %s68, %s70
    %p74 = scmp.eq.s32.totalorder %s13, 0
    %p75 = por %p73, %p74
    %p76 = scmp.ne.s32.totalorder %s68, %s70
    %p77 = scmp.eq.s32.totalorder %s18, 1
    %p78 = por %p76, %p77
    %p79 = scmp.ne.s32.totalorder %s70, %s71
    %p80 = scmp.eq.s32.totalorder %s18, 0
    %p81 = por %p79, %p80
    %p82 = scmp.ne.s32.totalorder %s70, %s71
    %p83 = scmp.eq.s32.totalorder %s19, 1
    %p84 = por %p82, %p83
    %p86 = scmp.ne.s32.totalorder %s71, %s85
    %p87 = scmp.eq.s32.totalorder %s19, 0
    %p88 = por %p86, %p87
    %s90 = sadd.s32 %s89, 1
    %p93 = scmp.eq.s32.totalorder %s13, 1
    %p94 = scmp.ne.s32.totalorder %s89, %s91
    %p95 = scmp.eq.s32.totalorder %s13, 0
    %p96 = por %p94, %p95
    %p97 = scmp.ne.s32.totalorder %s89, %s91
    %p98 = scmp.eq.s32.totalorder %s18, 1
    %p99 = por %p97, %p98
    %p100 = scmp.ne.s32.totalorder %s91, %s92
    %p101 = scmp.eq.s32.totalorder %s18, 0
    %p102 = por %p100, %p101
    %p103 = scmp.ne.s32.totalorder %s91, %s92
    %p104 = scmp.eq.s32.totalorder %s19, 1
    %p105 = por %p103, %p104
    %p107 = scmp.ne.s32.totalorder %s92, %s106
    %p108 = scmp.eq.s32.totalorder %s19, 0
    %p109 = por %p107, %p108
    %s111 = sadd.s32 %s110, 1
    %p114 = scmp.eq.s32.totalorder %s13, 1
    %p115 = scmp.ne.s32.totalorder %s110, %s112
    %p116 = scmp.eq.s32.totalorder %s13, 0
    %p117 = por %p115, %p116
    %p118 = scmp.ne.s32.totalorder %s110, %s112
    %p119 = scmp.eq.s32.totalorder %s18, 1
    %p120 = por %p118, %p119
    %p121 = scmp.ne.s32.totalorder %s112, %s113
    %p122 = scmp.eq.s32.totalorder %s18, 0
    %p123 = por %p121, %p122
    %p124 = scmp.ne.s32.totalorder %s112, %s113
    %p125 = scmp.eq.s32.totalorder %s19, 1
    %p126 = por %p124, %p125
    %p128 = scmp.ne.s32.totalorder %s113, %s127
    %p129 = scmp.eq.s32.totalorder %s19, 0
    %p130 = por %p128, %p129
    %s132 = sadd.s32 %s131, 1
    %p135 = scmp.eq.s32.totalorder %s13, 1
    %p136 = scmp.ne.s32.totalorder %s131, %s133
    %p137 = scmp.eq.s32.totalorder %s13, 0
    %p138 = por %p136, %p137
    %p139 = scmp.ne.s32.totalorder %s131, %s133
    %p140 = scmp.eq.s32.totalorder %s18, 1
    %p141 = por %p139, %p140
    %p142 = scmp.ne.s32.totalorder %s133, %s134
    %p143 = scmp.eq.s32.totalorder %s18, 0
    %p144 = por %p142, %p143
    %p145 = scmp.ne.s32.totalorder %s133, %s134
    %p146 = scmp.eq.s32.totalorder %s19, 1
    %p147 = por %p145, %p146
    %p149 = scmp.ne.s32.totalorder %s134, %s148
    %p150 = scmp.eq.s32.totalorder %s19, 0
    %p151 = por %p149, %p150
    %s153 = sadd.s32 %s152, 1
    %p156 = scmp.eq.s32.totalorder %s13, 1
    %p157 = scmp.ne.s32.totalorder %s152, %s154
    %p158 = scmp.eq.s32.totalorder %s13, 0
    %p159 = por %p157, %p158
    %p160 = scmp.ne.s32.totalorder %s152, %s154
    %p161 = scmp.eq.s32.totalorder %s18, 1
    %p162 = por %p160, %p161
    %p163 = scmp.ne.s32.totalorder %s154, %s155
    %p164 = scmp.eq.s32.totalorder %s18, 0
    %p165 = por %p163, %p164
    %p166 = scmp.ne.s32.totalorder %s154, %s155
    %p167 = scmp.eq.s32.totalorder %s19, 1
    %p168 = por %p166, %p167
    %p170 = scmp.ne.s32.totalorder %s155, %s169
    %p171 = scmp.eq.s32.totalorder %s19, 0
    %p172 = por %p170, %p171
    %s173 = ssub.s32 %s13, %s20
    %p174 = scmp.eq.s32.totalorder %s173, 0
    %s176 = sadd.s32 %s175, 1
    %s177 = scalar_select %p174, %s175, %s176
    %p180 = pneg %p174
    %p181 = scmp.eq.s32.totalorder %s13, 1
    %p182 = por %p180, %p181
    %p183 = scmp.ne.s32.totalorder %s175, %s178
    %p184 = scmp.eq.s32.totalorder %s13, 0
    %p185 = por %p183, %p184
    %p186 = scmp.ne.s32.totalorder %s175, %s178
    %p187 = scmp.eq.s32.totalorder %s18, 1
    %p188 = por %p186, %p187
    %p189 = scmp.ne.s32.totalorder %s178, %s179
    %p190 = scmp.eq.s32.totalorder %s18, 0
    %p191 = por %p189, %p190
    %p192 = scmp.ne.s32.totalorder %s178, %s179
    %p193 = scmp.eq.s32.totalorder %s19, 1
    %p194 = por %p192, %p193
    %p196 = scmp.ne.s32.totalorder %s179, %s195
    %p197 = scmp.eq.s32.totalorder %s19, 0
    %p198 = por %p196, %p197
    %p199 = scmp.le.s32.totalorder 1, %s13
    %p200 = scmp.lt.s32.totalorder %s13, 3
    %p201 = pnand %p199, %p200
    %p202 = pneg %p201
    // Predicated region
    $region9: #{double_conv.1} parent=5 // pred_check
      _
    $region10: #{double_conv.1} parent=5 // pred_check_branch
      %204 = sbr.rel (%p201) target = $region12
    $region11: #{double_conv.1} parent=5 // pred_region
      %s205 = ssub.s32 %s13, 1
      // Predicated region
      $region13: #{double_conv.1} parent=11 // pred_check
        %p206 = pneg %p60
      $region14: #{double_conv.1} parent=11 // pred_check_branch
        %208 = sbr.rel (%p206) target = $region16
      $region15: #{double_conv.1} parent=11 // pred_region
        _
      $region16: #{double_conv.1} parent=11 // pred_fallthru
        _
      // Predicated region
      $region17: #{double_conv.1} parent=11 // pred_check
        %p209 = pneg %p81
      $region18: #{double_conv.1} parent=11 // pred_check_branch
        %211 = sbr.rel (%p209) target = $region20
      $region19: #{double_conv.1} parent=11 // pred_region
        _
      $region20: #{double_conv.1} parent=11 // pred_fallthru
        _
      // Predicated region
      $region21: #{double_conv.1} parent=11 // pred_check
        %p212 = pneg %p102
      $region22: #{double_conv.1} parent=11 // pred_check_branch
        %214 = sbr.rel (%p212) target = $region24
      $region23: #{double_conv.1} parent=11 // pred_region
        _
      $region24: #{double_conv.1} parent=11 // pred_fallthru
        _
      // Predicated region
      $region25: #{double_conv.1} parent=11 // pred_check
        %p215 = pneg %p123
      $region26: #{double_conv.1} parent=11 // pred_check_branch
        %217 = sbr.rel (%p215) target = $region28
      $region27: #{double_conv.1} parent=11 // pred_region
        _
      $region28: #{double_conv.1} parent=11 // pred_fallthru
        _
      // Predicated region
      $region29: #{double_conv.1} parent=11 // pred_check
        %p218 = pneg %p144
      $region30: #{double_conv.1} parent=11 // pred_check_branch
        %220 = sbr.rel (%p218) target = $region32
      $region31: #{double_conv.1} parent=11 // pred_region
        _
      $region32: #{double_conv.1} parent=11 // pred_fallthru
        _
      // Predicated region
      $region33: #{double_conv.1} parent=11 // pred_check
        %p221 = pneg %p165
      $region34: #{double_conv.1} parent=11 // pred_check_branch
        %223 = sbr.rel (%p221) target = $region36
      $region35: #{double_conv.1} parent=11 // pred_region
        _
      $region36: #{double_conv.1} parent=11 // pred_fallthru
        _
    $region12: #{double_conv.1} parent=5 // pred_fallthru
      _
    %p224 = scmp.lt.s32.totalorder %s13, 2
    // Predicated region
    $region37: #{double_conv.1} parent=5 // pred_check
      %p225 = pneg %p224
    $region38: #{double_conv.1} parent=5 // pred_check_branch
      %227 = sbr.rel (%p225) target = $region40
    $region39: #{double_conv.1} parent=5 // pred_region
      // Predicated region
      $region41: #{double_conv.1} parent=39 // pred_check
        %p228 = pneg %p33
      $region42: #{double_conv.1} parent=39 // pred_check_branch
        %230 = sbr.rel (%p228) target = $region44
      $region43: #{double_conv.1} parent=39 // pred_region
        %p231 = scmp.lt.s32.totalorder %s13, 1
        %s232 = scalar_select %p231, %s13, 1
        %s233 = smul.addr %s232, 2
        %s234 = smul.addr %s233, 4
        %s235 = scalar_lea.vmem %s0, %s234
      $region44: #{double_conv.1} parent=39 // pred_fallthru
        _
    $region40: #{double_conv.1} parent=5 // pred_fallthru
      _
    %p236 = scmp.le.s32.totalorder 1, %s13
    %p237 = scmp.lt.s32.totalorder %s13, 3
    %p238 = pnand %p236, %p237
    %p239 = pneg %p238
    // Predicated region
    $region45: #{double_conv.1} parent=5 // pred_check
      _
    $region46: #{double_conv.1} parent=5 // pred_check_branch
      %241 = sbr.rel (%p238) target = $region48
    $region47: #{double_conv.1} parent=5 // pred_region
      %s242 = ssub.s32 %s13, 1
      %p243 = scmp.lt.s32.totalorder %s18, 1
      %s244 = scalar_select %p243, %s18, 1
      %s245 = smul.addr %s244, 2
      %s246 = smul.addr %s245, 4
      %s247 = scalar_lea.vmem %s0, %s246
      %p248 = pneg %p39
      %p249 = pneg %p36
      %p250 = pneg %p60
      %p251 = pneg %p57
      %p252 = pneg %p81
      %p253 = pneg %p78
      %p254 = pneg %p102
      %p255 = pneg %p99
      %p256 = pneg %p123
      %p257 = pneg %p120
      %p258 = pneg %p144
      %p259 = pneg %p141
      %p260 = pneg %p165
      %p261 = pneg %p162
      %p262 = pneg %p191
      %p263 = pneg %p188
      %p264 = scmp.lt.s32.totalorder %s18, 1
      %s265 = scalar_select %p264, %s18, 1
      %s266 = smul.addr %s265, 2
      %s267 = smul.addr %s266, 8
      %s268 = scalar_lea.vmem %s7, %s267
      %p269 = scmp.lt.s32.totalorder %s18, 1
      %s270 = scalar_select %p269, %s18, 1
      %s271 = smul.addr %s270, 2
      %s272 = smul.addr %s271, 4
      %s273 = scalar_lea.vmem %s0, %s272
      %p274 = scmp.lt.s32.totalorder %s18, 1
      %s275 = scalar_select %p274, %s18, 1
      %s276 = smul.addr %s275, 2
      %s277 = smul.addr %s276, 8
      %s278 = scalar_lea.vmem %s7, %s277
      %v280 = vld [vmem:[%s273] sm:$0xff]
      %v281 = vlaneseq
      %v282 = vand.u32 %v281, 127
      %v283 = vadd.s32 %v282, 128
      %v284 = vadd.s32 %v282, 256
      %v285 = vadd.s32 %v282, 384
      %v286 = vand.u32 %v282, 15
      %v287 = vand.u32 %v283, 15
      %v288 = vand.u32 %v284, 15
      %v289 = vand.u32 %v285, 15
      %vm290 = vcmp.ne.s32.totalorder %v286, 15
      %vm291 = vcmp.ne.s32.totalorder %v287, 15
      %vm292 = vcmp.ne.s32.totalorder %v288, 15
      %vm293 = vcmp.ne.s32.totalorder %v289, 15
      %v294 = vsel %vm290, 1, 0
      %v295 = vsel %vm291, 1, 0
      %v296 = vsel %vm292, 1, 0
      %v297 = vsel %vm293, 1, 0
      %v298 = vcvt.s32.f32 %v294
      %v299 = vcvt.s32.f32 %v295
      %v300 = vcvt.s32.f32 %v296
      %v301 = vcvt.s32.f32 %v297
      %vm302 = vcmp.ne.s32.totalorder %v286, 0
      %vm303 = vcmp.ne.s32.totalorder %v287, 0
      %vm304 = vcmp.ne.s32.totalorder %v288, 0
      %vm305 = vcmp.ne.s32.totalorder %v289, 0
      %v306 = vsel %vm302, 1, 0
      %v307 = vsel %vm303, 1, 0
      %v308 = vsel %vm304, 1, 0
      %v309 = vsel %vm305, 1, 0
      %v310 = vcvt.s32.f32 %v306
      %v311 = vcvt.s32.f32 %v307
      %v312 = vcvt.s32.f32 %v308
      %v313 = vcvt.s32.f32 %v309
      %v314 = vld [vmem:[%s1] sm:$0xf]
      %316 = vst [vmem:[#allocation1] ss:$2 sm:$0xff] %v280
      %v317 = vld.sshfl [vmem:[#allocation1] sm:$0xff pattern:$0x75316420]
      %v318 = vld.sshfl [vmem:[#allocation1 + $0x8] sm:$0xff pattern:$0x75316420]
      %v321 = vmul.f32 %v298, 0.0
      %v322 = vmul.f32 %v317, %v299
      %v323 = vmul.f32 %v318, %v300
      %v324 = vmul.f32 %v301, 0.0
      %v325 = vmul.f32 %v310, 0.0
      %v326 = vmul.f32 %v317, %v311
      %v327 = vmul.f32 %v318, %v312
      %v328 = vmul.f32 %v313, 0.0
      %v330 = vrot.slane 0.0, 4
      %v331 = vrot.slane %v317, 4
      %v332 = vrot.slane %v318, 4
      %333 = vrot.lane.b32.xlu0 %v330, 127
      %v334 = vpop.permute.xlu0 %333
      %335 = vrot.lane.b32.xlu0 %v331, 127
      %v336 = vpop.permute.xlu0 %335
      %337 = vrot.lane.b32.xlu0 %v332, 127
      %v338 = vpop.permute.xlu0 %337
      %vm339 = vcmask 1039360
      %v340 = vsel %vm339, %v334, %v336
      %v341 = vsel %vm339, %v336, %v338
      %348 = vrot.lane.b32.xlu0 %v325, 126
      %v349 = vpop.permute.xlu0 %348
      %350 = vrot.lane.b32.xlu0 %v326, 126
      %v351 = vpop.permute.xlu0 %350
      %352 = vrot.lane.b32.xlu0 %v327, 126
      %v353 = vpop.permute.xlu0 %352
      %vm354 = vcmask 1031168
      %v355 = vsel %vm354, %v349, %v351
      %v356 = vsel %vm354, %v351, %v353
      %v363 = vrot.slane %v321, 4
      %v364 = vrot.slane %v322, 4
      %v365 = vrot.slane %v323, 4
      %366 = vrot.lane.b32.xlu0 %v363, 112
      %v367 = vpop.permute.xlu0 %366
      %368 = vrot.lane.b32.xlu0 %v364, 112
      %v369 = vpop.permute.xlu0 %368
      %370 = vrot.lane.b32.xlu0 %v365, 112
      %v371 = vpop.permute.xlu0 %370
      %vm372 = vcmask 916480
      %v373 = vsel %vm372, %v367, %v369
      %v374 = vsel %vm372, %v369, %v371
      %378 = vrot.lane.b32.xlu0 %v317, 111
      %v379 = vpop.permute.xlu0 %378
      %380 = vrot.lane.b32.xlu0 %v318, 111
      %v381 = vpop.permute.xlu0 %380
      %vm382 = vcmask 908288
      %v383 = vsel %vm382, %v379, %v381
      %v388 = vrot.slane %v326, 4
      %v389 = vrot.slane %v327, 4
      %v390 = vrot.slane %v328, 4
      %391 = vrot.lane.b32.xlu0 %v388, 110
      %v392 = vpop.permute.xlu0 %391
      %393 = vrot.lane.b32.xlu0 %v389, 110
      %v394 = vpop.permute.xlu0 %393
      %395 = vrot.lane.b32.xlu0 %v390, 110
      %v396 = vpop.permute.xlu0 %395
      %vm397 = vcmask 900096
      %v398 = vsel %vm397, %v392, %v394
      %v399 = vsel %vm397, %v394, %v396
      %404 = vrot.lane.b32.xlu0 %v322, 96
      %v405 = vpop.permute.xlu0 %404
      %406 = vrot.lane.b32.xlu0 %v323, 96
      %v407 = vpop.permute.xlu0 %406
      %408 = vrot.lane.b32.xlu0 %v324, 96
      %v409 = vpop.permute.xlu0 %408
      %vm410 = vcmask 785408
      %v411 = vsel %vm410, %v405, %v407
      %v412 = vsel %vm410, %v407, %v409
      %416 = vrot.lane.b32.xlu0 %v331, 95
      %v417 = vpop.permute.xlu0 %416
      %418 = vrot.lane.b32.xlu0 %v332, 95
      %v419 = vpop.permute.xlu0 %418
      %420 = vrot.lane.b32.xlu0 %v330, 95
      %v421 = vpop.permute.xlu0 %420
      %vm422 = vcmask 777216
      %v423 = vsel %vm422, %v417, %v419
      %v424 = vsel %vm422, %v419, %v421
      %428 = vrot.lane.b32.xlu0 %v326, 94
      %v429 = vpop.permute.xlu0 %428
      %430 = vrot.lane.b32.xlu0 %v327, 94
      %v431 = vpop.permute.xlu0 %430
      %432 = vrot.lane.b32.xlu0 %v328, 94
      %v433 = vpop.permute.xlu0 %432
      %vm434 = vcmask 769024
      %v435 = vsel %vm434, %v429, %v431
      %v436 = vsel %vm434, %v431, %v433
      %vm440 = vcmask 1043456
      %v441 = vsel %vm440, %v321, %v340
      %v442 = vsel %vm440, %v322, %v341
      %v443 = vsel %vm440, %v323, %v338
      %v444 = vsel %vm440, %v355, %v373
      %v445 = vsel %vm440, %v356, %v374
      %v446 = vsel %vm440, %v353, %v371
      %v447 = vsel %vm440, %v379, %v392
      %v448 = vsel %vm440, %v383, %v398
      %v449 = vsel %vm440, %v381, %v399
      %v450 = vsel %vm440, %v405, %v417
      %v451 = vsel %vm440, %v411, %v423
      %v452 = vsel %vm440, %v412, %v424
      %v453 = vpack.c.bf16 %v444, %v441
      %v454 = vpack.c.bf16 %v445, %v442
      %v455 = vpack.c.bf16 %v446, %v443
      %v456 = vpack.c.bf16 %v450, %v447
      %v457 = vpack.c.bf16 %v451, %v448
      %v458 = vpack.c.bf16 %v452, %v449
      %v459 = vpack.c.bf16 %v429, %v429
      %v460 = vpack.c.bf16 %v435, %v435
      %v461 = vpack.c.bf16 %v436, %v436
      %471 = vrot.lane.b32.xlu0 %v453, 17
      %v472 = vpop.permute.xlu0 %471
      %473 = vrot.lane.b32.xlu0 %v454, 17
      %v474 = vpop.permute.xlu0 %473
      %475 = vrot.lane.b32.xlu0 %v455, 17
      %v476 = vpop.permute.xlu0 %475
      %477 = vrot.lane.b32.xlu0 %v456, 17
      %v478 = vpop.permute.xlu0 %477
      %479 = vrot.lane.b32.xlu0 %v457, 17
      %v480 = vpop.permute.xlu0 %479
      %481 = vrot.lane.b32.xlu0 %v458, 17
      %v482 = vpop.permute.xlu0 %481
      %483 = vrot.lane.b32.xlu0 %v459, 17
      %v484 = vpop.permute.xlu0 %483
      %485 = vrot.lane.b32.xlu0 %v460, 17
      %v486 = vpop.permute.xlu0 %485
      %487 = vrot.lane.b32.xlu0 %v461, 17
      %v488 = vpop.permute.xlu0 %487
      %vm489 = vcmask 138240
      %v490 = vsel %vm489, %v472, %v474
      %v491 = vsel %vm489, %v474, %v476
      %v492 = vsel %vm489, %v478, %v480
      %v493 = vsel %vm489, %v480, %v482
      %v494 = vsel %vm489, %v484, %v486
      %v495 = vsel %vm489, %v486, %v488
      %vm500 = vcmask 293888
      %v502 = vsel %vm500, %v314, 0
      %vm504 = vcmask 1041408
      %v506 = vsel %vm504, %v494, 0
      %v509 = vsel %vm504, %v495, 0
      %511 = vmatpush.bf16.msra.mxu0 0
      %512 = vmatpush.bf16.msra.mxu0 0
      %513 = vmatpush.bf16.msra.mxu0 0
      %514 = vmatpush.bf16.msra.mxu0 0
      %515 = vmatpush.bf16.msra.mxu0 0
      %516 = vmatpush.bf16.msra.mxu0 %v506
      %517 = vmatpush.bf16.msra.mxu0 %v492
      %518 = vmatpush.bf16.msra.mxu0 %v490
      %519 = vmatmul.bf16.gmra.mxu0 %v502
      %v520 = vpop.f32.mrf.mxu0
      %v521 = vadd.f32 0.0, %v520
      %v522 = vpop.f32.mrf.mxu0
      %523 = vdwg.mxu0
      %524 = vmatpush.bf16.msra.mxu0 0
      %525 = vmatpush.bf16.msra.mxu0 0
      %526 = vmatpush.bf16.msra.mxu0 0
      %527 = vmatpush.bf16.msra.mxu0 0
      %528 = vmatpush.bf16.msra.mxu0 0
      %529 = vmatpush.bf16.msra.mxu0 %v509
      %530 = vmatpush.bf16.msra.mxu0 %v493
      %531 = vmatpush.bf16.msra.mxu0 %v491
      %532 = vmatmul.bf16.gmra.mxu0 %v502
      %v533 = vpop.f32.mrf.mxu0
      %v534 = vadd.f32 0.0, %v533
      %v535 = vpop.f32.mrf.mxu0
      %536 = vdwg.mxu0
      %v537 = vld [vmem:[%s2] sm:$0xff]
      %v538 = vld [vmem:[%s3] sm:$0xff]
      %v539 = vadd.f32 %v521, %v534
      %540 = vadd.xlane.f32.xlu0 %v539
      %v541 = vpop.xlane.xlu0 %540
      %v542 = vrot.slane %v541, 4
      %v543 = vadd.f32 %v541, %v542
      %v544 = vrot.slane %v543, 2
      %v545 = vadd.f32 %v543, %v544
      %v546 = vrot.slane %v545, 1
      %v547 = vadd.f32 %v545, %v546
      %s548 = vtos %v547
      %s549 = smul.f32 %s548, 0.00048828125
      %v550 = vstv %s549
      %v551 = vsub.f32 %v521, %v550
      %v552 = vsub.f32 %v534, %v550
      %v553 = vmul.f32 %v551, %v551
      %v554 = vmul.f32 %v552, %v552
      %v555 = vadd.f32 %v553, %v554
      %556 = vadd.xlane.f32.xlu0 %v555
      %v557 = vpop.xlane.xlu0 %556
      %v558 = vrot.slane %v557, 4
      %v559 = vadd.f32 %v557, %v558
      %v560 = vrot.slane %v559, 2
      %v561 = vadd.f32 %v559, %v560
      %v562 = vrot.slane %v561, 1
      %v563 = vadd.f32 %v561, %v562
      %s564 = vtos %v563
      %s565 = smul.f32 %s564, 0.00048828125
      %s566 = sadd.f32 %s565, 1e-05
      %v567 = vstv %s566
      %v568 = vrsqrt.pop %v567
      %v569 = vmul.f32 %v568, %v567
      %v570 = vmul.f32 %v569, %v568
      %v571 = vmul.f32 0.5, %v570
      %v572 = vsub.f32 1.5, %v571
      %v573 = vmul.f32 %v568, %v572
      %vm574 = vweird.f32 %v567
      %vm575 = vweird.f32 %v568
      %vm576 = vmor %vm574, %vm575
      %v577 = vsel %vm576, %v568, %v573
      %s578 = vtos %v577
      %v579 = vstv %s578
      %v580 = vmul.f32 %v551, %v579
      %v581 = vmul.f32 %v552, %v579
      %583 = vset.pattern.permute.xlu0 0
      %584 = vperm.xlu0 %583, %v537
      %v585 = vpop.permute.xlu0 %584
      %v587 = vmul.f32 %v580, %v585
      %v588 = vmul.f32 %v581, %v585
      %590 = vset.pattern.permute.xlu0 0
      %591 = vperm.xlu0 %590, %v538
      %v592 = vpop.permute.xlu0 %591
      %v594 = vadd.f32 %v587, %v592
      %v595 = vadd.f32 %v588, %v592
      %v596 = vmul.f32 %v594, 0.5
      %v597 = vmul.f32 %v595, 0.5
      %v598 = vmul.f32 %v594, 0.70710677
      %v599 = vmul.f32 %v595, 0.70710677
      %v600 = vand.u32 2147483647, %v598
      %v601 = vand.u32 2147483647, %v599
      %v602 = vmul.f32 %v600, 0.3275911
      %v603 = vmul.f32 %v601, 0.3275911
      %v604 = vadd.f32 %v602, 1.0
      %v605 = vadd.f32 %v603, 1.0
      %v606 = vrcp.pop %v604
      %v607 = vrcp.pop %v605
      %v608 = vmul.f32 %v606, 1.0614054
      %v609 = vmul.f32 %v607, 1.0614054
      %v610 = vadd.f32 %v608, -1.4531521
      %v611 = vadd.f32 %v609, -1.4531521
      %v612 = vmul.f32 %v610, %v606
      %v613 = vmul.f32 %v611, %v607
      %v614 = vadd.f32 %v612, 1.4214138
      %v615 = vadd.f32 %v613, 1.4214138
      %v616 = vmul.f32 %v614, %v606
      %v617 = vmul.f32 %v615, %v607
      %v618 = vadd.f32 %v616, -0.28449672
      %v619 = vadd.f32 %v617, -0.28449672
      %v620 = vmul.f32 %v618, %v606
      %v621 = vmul.f32 %v619, %v607
      %v622 = vadd.f32 %v620, 0.2548296
      %v623 = vadd.f32 %v621, 0.2548296
      %v624 = vmul.f32 %v622, %v606
      %v625 = vmul.f32 %v623, %v607
      %v626 = vsub.f32 0.0, %v600
      %v627 = vsub.f32 0.0, %v601
      %v628 = vmul.f32 %v626, %v600
      %v629 = vmul.f32 %v627, %v601
      %v630 = vmul.f32 %v628, 1.442695
      %v631 = vpow.pop %v630
      %v632 = vmul.f32 %v629, 1.442695
      %v633 = vpow.pop %v632
      %v634 = vmul.f32 %v624, %v631
      %v635 = vmul.f32 %v625, %v633
      %v636 = vsub.f32 1.0, %v634
      %v637 = vsub.f32 1.0, %v635
      %vm638 = vcmp.ge.f32.partialorder %v598, 0.0
      %vm639 = vcmp.ge.f32.partialorder %v599, 0.0
      %v640 = vsub.f32 0.0, %v636
      %v641 = vsub.f32 0.0, %v637
      %v642 = vsel %vm638, %v636, %v640
      %v643 = vsel %vm639, %v637, %v641
      %v644 = vadd.f32 %v642, 1.0
      %v645 = vadd.f32 %v643, 1.0
      %v646 = vmul.f32 %v596, %v644
      %v647 = vmul.f32 %v597, %v645
      %v648 = vld [vmem:[%s4] sm:$0xf]
      %v649 = vmul.f32 %v646, %v299
      %v650 = vmul.f32 %v647, %v300
      %v651 = vmul.f32 %v646, %v311
      %v652 = vmul.f32 %v647, %v312
      %655 = vrot.lane.b32.xlu0 0.0, 127
      %v656 = vpop.permute.xlu0 %655
      %657 = vrot.lane.b32.xlu0 %v646, 127
      %v658 = vpop.permute.xlu0 %657
      %659 = vrot.lane.b32.xlu0 %v647, 127
      %v660 = vpop.permute.xlu0 %659
      %v661 = vsel %vm339, %v656, %v658
      %v662 = vsel %vm339, %v658, %v660
      %668 = vrot.lane.b32.xlu0 %v651, 126
      %v669 = vpop.permute.xlu0 %668
      %670 = vrot.lane.b32.xlu0 %v652, 126
      %v671 = vpop.permute.xlu0 %670
      %v672 = vsel %vm354, %v349, %v669
      %v673 = vsel %vm354, %v669, %v671
      %679 = vrot.lane.b32.xlu0 %v321, 112
      %v680 = vpop.permute.xlu0 %679
      %681 = vrot.lane.b32.xlu0 %v649, 112
      %v682 = vpop.permute.xlu0 %681
      %683 = vrot.lane.b32.xlu0 %v650, 112
      %v684 = vpop.permute.xlu0 %683
      %v685 = vsel %vm372, %v680, %v682
      %v686 = vsel %vm372, %v682, %v684
      %690 = vrot.lane.b32.xlu0 %v646, 111
      %v691 = vpop.permute.xlu0 %690
      %692 = vrot.lane.b32.xlu0 %v647, 111
      %v693 = vpop.permute.xlu0 %692
      %v694 = vsel %vm382, %v691, %v693
      %698 = vrot.lane.b32.xlu0 %v651, 110
      %v699 = vpop.permute.xlu0 %698
      %700 = vrot.lane.b32.xlu0 %v652, 110
      %v701 = vpop.permute.xlu0 %700
      %702 = vrot.lane.b32.xlu0 %v328, 110
      %v703 = vpop.permute.xlu0 %702
      %v704 = vsel %vm397, %v699, %v701
      %v705 = vsel %vm397, %v701, %v703
      %709 = vrot.lane.b32.xlu0 %v649, 96
      %v710 = vpop.permute.xlu0 %709
      %711 = vrot.lane.b32.xlu0 %v650, 96
      %v712 = vpop.permute.xlu0 %711
      %v713 = vsel %vm410, %v710, %v712
      %v714 = vsel %vm410, %v712, %v409
      %718 = vrot.lane.b32.xlu0 %v646, 95
      %v719 = vpop.permute.xlu0 %718
      %720 = vrot.lane.b32.xlu0 %v647, 95
      %v721 = vpop.permute.xlu0 %720
      %722 = vrot.lane.b32.xlu0 0.0, 95
      %v723 = vpop.permute.xlu0 %722
      %v724 = vsel %vm422, %v719, %v721
      %v725 = vsel %vm422, %v721, %v723
      %729 = vrot.lane.b32.xlu0 %v651, 94
      %v730 = vpop.permute.xlu0 %729
      %731 = vrot.lane.b32.xlu0 %v652, 94
      %v732 = vpop.permute.xlu0 %731
      %v733 = vsel %vm434, %v730, %v732
      %v734 = vsel %vm434, %v732, %v433
      %v738 = vpack.c.bf16 %v661, %v321
      %v739 = vpack.c.bf16 %v662, %v649
      %v740 = vpack.c.bf16 %v660, %v650
      %v741 = vpack.c.bf16 %v685, %v672
      %v742 = vpack.c.bf16 %v686, %v673
      %v743 = vpack.c.bf16 %v684, %v671
      %v744 = vpack.c.bf16 %v699, %v691
      %v745 = vpack.c.bf16 %v704, %v694
      %v746 = vpack.c.bf16 %v705, %v693
      %v747 = vpack.c.bf16 %v719, %v710
      %v748 = vpack.c.bf16 %v724, %v713
      %v749 = vpack.c.bf16 %v725, %v714
      %v750 = vpack.c.bf16 %v730, %v730
      %v751 = vpack.c.bf16 %v733, %v733
      %v752 = vpack.c.bf16 %v734, %v734
      %768 = vrot.lane.b32.xlu0 %v738, 17
      %v769 = vpop.permute.xlu0 %768
      %770 = vrot.lane.b32.xlu0 %v739, 17
      %v771 = vpop.permute.xlu0 %770
      %772 = vrot.lane.b32.xlu0 %v740, 17
      %v773 = vpop.permute.xlu0 %772
      %774 = vrot.lane.b32.xlu0 %v741, 17
      %v775 = vpop.permute.xlu0 %774
      %776 = vrot.lane.b32.xlu0 %v742, 17
      %v777 = vpop.permute.xlu0 %776
      %778 = vrot.lane.b32.xlu0 %v743, 17
      %v779 = vpop.permute.xlu0 %778
      %780 = vrot.lane.b32.xlu0 %v744, 17
      %v781 = vpop.permute.xlu0 %780
      %782 = vrot.lane.b32.xlu0 %v745, 17
      %v783 = vpop.permute.xlu0 %782
      %784 = vrot.lane.b32.xlu0 %v746, 17
      %v785 = vpop.permute.xlu0 %784
      %786 = vrot.lane.b32.xlu0 %v747, 17
      %v787 = vpop.permute.xlu0 %786
      %788 = vrot.lane.b32.xlu0 %v748, 17
      %v789 = vpop.permute.xlu0 %788
      %790 = vrot.lane.b32.xlu0 %v749, 17
      %v791 = vpop.permute.xlu0 %790
      %792 = vrot.lane.b32.xlu0 %v750, 17
      %v793 = vpop.permute.xlu0 %792
      %794 = vrot.lane.b32.xlu0 %v751, 17
      %v795 = vpop.permute.xlu0 %794
      %796 = vrot.lane.b32.xlu0 %v752, 17
      %v797 = vpop.permute.xlu0 %796
      %v798 = vsel %vm489, %v769, %v771
      %v799 = vsel %vm489, %v771, %v773
      %v800 = vsel %vm489, %v775, %v777
      %v801 = vsel %vm489, %v777, %v779
      %v802 = vsel %vm489, %v781, %v783
      %v803 = vsel %vm489, %v783, %v785
      %v804 = vsel %vm489, %v787, %v789
      %v805 = vsel %vm489, %v789, %v791
      %v806 = vsel %vm489, %v793, %v795
      %v807 = vsel %vm489, %v795, %v797
      %vm816 = vcmask 588800
      %v818 = vsel %vm816, %v648, 0
      %v821 = vsel %vm440, %v806, 0
      %v824 = vsel %vm440, %v807, 0
      %826 = vmatpush.bf16.msra.mxu0 0
      %827 = vmatpush.bf16.msra.mxu0 0
      %828 = vmatpush.bf16.msra.mxu0 0
      %829 = vmatpush.bf16.msra.mxu0 %v821
      %830 = vmatpush.bf16.msra.mxu0 %v804
      %831 = vmatpush.bf16.msra.mxu0 %v802
      %832 = vmatpush.bf16.msra.mxu0 %v800
      %833 = vmatpush.bf16.msra.mxu0 %v798
      %834 = vmatmul.bf16.gmra.mxu0 %v818
      %v835 = vpop.f32.mrf.mxu0
      %v836 = vadd.f32 0.0, %v835
      %v837 = vpop.f32.mrf.mxu0
      %838 = vdwg.mxu0
      %839 = vmatpush.bf16.msra.mxu0 0
      %840 = vmatpush.bf16.msra.mxu0 0
      %841 = vmatpush.bf16.msra.mxu0 0
      %842 = vmatpush.bf16.msra.mxu0 %v824
      %843 = vmatpush.bf16.msra.mxu0 %v805
      %844 = vmatpush.bf16.msra.mxu0 %v803
      %845 = vmatpush.bf16.msra.mxu0 %v801
      %846 = vmatpush.bf16.msra.mxu0 %v799
      %847 = vmatmul.bf16.gmra.mxu0 %v818
      %v848 = vpop.f32.mrf.mxu0
      %v849 = vadd.f32 0.0, %v848
      %v850 = vpop.f32.mrf.mxu0
      %851 = vdwg.mxu0
      %v852 = vld [vmem:[%s5] sm:$0xff]
      %v853 = vld [vmem:[%s6] sm:$0xff]
      %v854 = vadd.f32 %v836, %v849
      %855 = vadd.xlane.f32.xlu0 %v854
      %v856 = vpop.xlane.xlu0 %855
      %v857 = vrot.slane %v856, 4
      %v858 = vadd.f32 %v856, %v857
      %v859 = vrot.slane %v858, 2
      %v860 = vadd.f32 %v858, %v859
      %v861 = vrot.slane %v860, 1
      %v862 = vadd.f32 %v860, %v861
      %s863 = vtos %v862
      %s864 = smul.f32 %s863, 0.00048828125
      %v865 = vstv %s864
      %v866 = vsub.f32 %v836, %v865
      %v867 = vsub.f32 %v849, %v865
      %v868 = vmul.f32 %v866, %v866
      %v869 = vmul.f32 %v867, %v867
      %v870 = vadd.f32 %v868, %v869
      %871 = vadd.xlane.f32.xlu0 %v870
      %v872 = vpop.xlane.xlu0 %871
      %v873 = vrot.slane %v872, 4
      %v874 = vadd.f32 %v872, %v873
      %v875 = vrot.slane %v874, 2
      %v876 = vadd.f32 %v874, %v875
      %v877 = vrot.slane %v876, 1
      %v878 = vadd.f32 %v876, %v877
      %s879 = vtos %v878
      %s880 = smul.f32 %s879, 0.00048828125
      %s881 = sadd.f32 %s880, 1e-05
      %v882 = vstv %s881
      %v883 = vrsqrt.pop %v882
      %v884 = vmul.f32 %v883, %v882
      %v885 = vmul.f32 %v884, %v883
      %v886 = vmul.f32 0.5, %v885
      %v887 = vsub.f32 1.5, %v886
      %v888 = vmul.f32 %v883, %v887
      %vm889 = vweird.f32 %v882
      %vm890 = vweird.f32 %v883
      %vm891 = vmor %vm889, %vm890
      %v892 = vsel %vm891, %v883, %v888
      %s893 = vtos %v892
      %v894 = vstv %s893
      %v895 = vmul.f32 %v866, %v894
      %v896 = vmul.f32 %v867, %v894
      %898 = vset.pattern.permute.xlu0 0
      %899 = vperm.xlu0 %898, %v852
      %v900 = vpop.permute.xlu0 %899
      %v902 = vmul.f32 %v895, %v900
      %v903 = vmul.f32 %v896, %v900
      %905 = vset.pattern.permute.xlu0 0
      %906 = vperm.xlu0 %905, %v853
      %v907 = vpop.permute.xlu0 %906
      %v909 = vadd.f32 %v902, %v907
      %v910 = vadd.f32 %v903, %v907
      %911 = vst [vmem:[%s278] sm:$0xff] %v909
      %912 = vst [vmem:[%s278 + $0x8] sm:$0xff] %v910
      %p913 = scmp.lt.s32.totalorder %s18, 1
      %s914 = scalar_select %p913, %s18, 1
      %s915 = smul.addr %s914, 2
      %s916 = smul.addr %s915, 8
      %s917 = scalar_lea.vmem %s7, %s916
      // Predicated region
      $region49: #{double_conv.1} parent=47 // pred_check
        %p918 = pneg %p188
      $region50: #{double_conv.1} parent=47 // pred_check_branch
        %920 = sbr.rel (%p918) target = $region52
      $region51: #{double_conv.1} parent=47 // pred_region
        _
      $region52: #{double_conv.1} parent=47 // pred_fallthru
        _
    $region48: #{double_conv.1} parent=5 // pred_fallthru
      _
    %p921 = scmp.le.s32.totalorder 2, %s13
    // Predicated region
    $region53: #{double_conv.1} parent=5 // pred_check
      %p922 = pneg %p921
    $region54: #{double_conv.1} parent=5 // pred_check_branch
      %924 = sbr.rel (%p922) target = $region56
    $region55: #{double_conv.1} parent=5 // pred_region
      %s925 = ssub.s32 %s13, 2
      // Predicated region
      $region57: #{double_conv.1} parent=55 // pred_check
        %p926 = pneg %p194
      $region58: #{double_conv.1} parent=55 // pred_check_branch
        %928 = sbr.rel (%p926) target = $region60
      $region59: #{double_conv.1} parent=55 // pred_region
        %p929 = scmp.lt.s32.totalorder %s19, 1
        %s930 = scalar_select %p929, %s19, 1
        %s931 = smul.addr %s930, 2
        %s932 = smul.addr %s931, 8
        %s933 = scalar_lea.vmem %s7, %s932
      $region60: #{double_conv.1} parent=55 // pred_fallthru
        _
    $region56: #{double_conv.1} parent=5 // pred_fallthru
      _
  $region6: #{double_conv.1} parent=0 // loop_footer
    %s17 = sadd.s32 1, %s13
  $region7: #{double_conv.1} parent=0 // loop_footer_branch
    %12 = sbr.rel target = $region3
  $region8: #{double_conv.1} parent=0 // loop_exit
    _

</llo_original>
